<compile_context>
chip_gen: v7x
topology: tpu7x:2x2x1
jax: 0.10.0
libtpu: 0.0.40
codegen_flags: <defaults>
</compile_context>

<pallas_src>
import math

import numpy as np
import jax
import jax.numpy as jnp
from jax.experimental import pallas as pl
from jax.experimental.pallas import tpu as pltpu

_SMEM = pl.BlockSpec(memory_space=pltpu.MemorySpace.SMEM)
_VMEM = pl.BlockSpec(memory_space=pltpu.MemorySpace.VMEM)


# -----------------------------------------------------------------------------
# Fused evaluation kernel
# -----------------------------------------------------------------------------
def _warp_dist2(src_ref, m_ref, tgt_ref):
    """||tgt - (R @ src + t)||^2 for lane-major (3, N) points.

    m_ref is an SMEM (3, 4) ref holding [R | t]; scalar reads broadcast across
    lanes on the VPU (exact f32, no MXU).
    """
    s0 = src_ref[0:1, :]
    s1 = src_ref[1:2, :]
    s2 = src_ref[2:3, :]
    dx = tgt_ref[0:1, :] - (m_ref[0, 0] * s0 + m_ref[0, 1] * s1 +
                            m_ref[0, 2] * s2 + m_ref[0, 3])
    dy = tgt_ref[1:2, :] - (m_ref[1, 0] * s0 + m_ref[1, 1] * s1 +
                            m_ref[1, 2] * s2 + m_ref[1, 3])
    dz = tgt_ref[2:3, :] - (m_ref[2, 0] * s0 + m_ref[2, 1] * s1 +
                            m_ref[2, 2] * s2 + m_ref[2, 3])
    return dx * dx + dy * dy + dz * dz


def _make_fused_kernel(radius2, inv_nc, inv_ns, inv_p, acc_rmse, fmr_thr):
    def kernel(gt_rt_ref, re_rt_ref, refc_ref, srcc_ref, srcp_ref,
               pkey_ref, gkey_ref, out_ref):
        # ---- IR: fine inlier ratio (compare d^2 < r^2, no sqrt) -------------
        d2 = _warp_dist2(srcc_ref, gt_rt_ref, refc_ref)             # (1, NC)
        ir = jnp.sum(jnp.where(d2 < radius2, 1.0, 0.0),
                     axis=1, keepdims=True) * inv_nc                # (1, 1)

        # ---- RMSE: mean realignment error over src_points -------------------
        d2r = _warp_dist2(srcp_ref, re_rt_ref, srcp_ref)            # (1, NS)
        rmse = jnp.sum(jnp.sqrt(d2r), axis=1, keepdims=True) * inv_ns

        # ---- PIR: coarse precision via packed-key equality -------------------
        match = (pkey_ref[...] == gkey_ref[...]).astype(jnp.int32)  # (P, G)
        hit = jnp.max(match, axis=1, keepdims=True)                 # (P, 1)
        pir = jnp.sum(hit.astype(jnp.float32),
                      axis=0, keepdims=True) * inv_p                # (1, 1)

        # ---- thresholded metrics --------------------------------------------
        rr = jnp.where(rmse < acc_rmse, 1.0, 0.0)
        fmr = jnp.where(ir > fmr_thr, 1.0, 0.0)

        out_ref[:, 0:1] = ir
        out_ref[:, 1:2] = rmse
        out_ref[:, 2:3] = pir
        out_ref[:, 3:4] = rr
        out_ref[:, 4:5] = fmr
        out_ref[:, 5:8] = jnp.zeros((1, 3), jnp.float32)

    return kernel


def _fused_evaluate(cfg, output_dict, data_dict, realignment):
    """Single pallas_call returning (IR, RMSE, PIR, RR, FMR)."""
    ref_corr = output_dict['ref_corr_points'].astype(jnp.float32)
    src_corr = output_dict['src_corr_points'].astype(jnp.float32)
    src_pts = output_dict['src_points'].astype(jnp.float32)
    transform = data_dict['transform'].astype(jnp.float32)

    nc = ref_corr.shape[0]
    ns = src_pts.shape[0]
    nrc = output_dict['ref_points_c'].shape[0]
    nsc = output_dict['src_points_c'].shape[0]
    assert nrc * nsc < 2 ** 31, "packed int32 coarse-match key would overflow"

    gt_idx = output_dict['gt_node_corr_indices'].astype(jnp.int32)
    gt_ov = output_dict['gt_node_corr_overlaps'].astype(jnp.float32)
    p_ref = output_dict['ref_node_corr_indices'].astype(jnp.int32)
    p_src = output_dict['src_node_corr_indices'].astype(jnp.int32)
    p = p_ref.shape[0]

    # Lane-major (3, N) point layouts (points dense on the 128-lane axis).
    ref_corr_t = ref_corr.T
    src_corr_t = src_corr.T
    src_pts_t = src_pts.T

    # [R | t] transforms for SMEM.
    gt_rt = transform[:3, :4]
    re_rt = realignment[:3, :4].astype(jnp.float32)

    # Packed coarse-match keys; invalid gt keys -> -1 (pred keys are >= 0).
    gkey = jnp.where(gt_ov > cfg['acceptance_overlap'],
                     gt_idx[:, 0] * nsc + gt_idx[:, 1],
                     jnp.int32(-1)).reshape(1, -1)                  # (1, G)
    pkey = (p_ref * nsc + p_src).reshape(-1, 1)                     # (P, 1)

    kernel = _make_fused_kernel(
        radius2=float(cfg['acceptance_radius']) ** 2,
        inv_nc=1.0 / max(nc, 1),
        inv_ns=1.0 / max(ns, 1),
        inv_p=1.0 / max(p, 1),
        acc_rmse=float(cfg['acceptance_rmse']),
        fmr_thr=float(cfg['fmr_threshold']),
    )

    out = pl.pallas_call(
        kernel,
        out_shape=jax.ShapeDtypeStruct((1, 8), jnp.float32),
        in_specs=[_SMEM, _SMEM, _VMEM, _VMEM, _VMEM, _VMEM, _VMEM],
        out_specs=_VMEM,
    )(gt_rt, re_rt, ref_corr_t, src_corr_t, src_pts_t, pkey, gkey)

    return out[0, 0], out[0, 1], out[0, 2], out[0, 3], out[0, 4]


# -----------------------------------------------------------------------------
# Evaluator forward (no learned parameters; only cfg thresholds)
# -----------------------------------------------------------------------------
def evaluator_forward(cfg, output_dict, data_dict):
    transform = data_dict['transform'].astype(jnp.float32)
    est_transform = output_dict['estimated_transform'].astype(jnp.float32)

    # isotropic_transform_error — tiny 3x3/4x4 glue, kept in plain JAX.
    R_gt, t_gt = transform[:3, :3], transform[:3, 3]
    R_est, t_est = est_transform[:3, :3], est_transform[:3, 3]
    trace = jnp.sum(R_est * R_gt)                 # == trace(R_est^T @ R_gt)
    x = jnp.clip(0.5 * (trace - 1.0), -1.0, 1.0)
    rre = 180.0 * jnp.arccos(x) / math.pi
    rte = jnp.linalg.norm(t_gt - t_est)
    realignment = jnp.linalg.inv(transform) @ est_transform

    ir, rmse, pir, recall, fmr = _fused_evaluate(cfg, output_dict, data_dict,
                                                 realignment)

    # TODO(synk): save_matching_results writes .npz files — omitted (no file I/O).
    # TODO(synk): for production-scale point clouds (1e4+ points) add a 1-D
    #   lane-major grid over N with VMEM accumulators and per-generation VMEM
    #   budgets; a single fused block is optimal at these evaluation sizes.
    return {'PIR': pir, 'IR': ir, 'RRE': rre, 'RTE': rte,
            'RMSE': rmse, 'RR': recall, 'FMR': fmr}


# -----------------------------------------------------------------------------
# Helpers for data construction + numpy reference
# -----------------------------------------------------------------------------
def _rot_z(theta):
    c, s = math.cos(theta), math.sin(theta)
    return jnp.array([[c, -s, 0.0], [s, c, 0.0], [0.0, 0.0, 1.0]], jnp.float32)


def _make_transform(rotation, translation):
    T = jnp.eye(4, dtype=jnp.float32)
    T = T.at[:3, :3].set(rotation)
    T = T.at[:3, 3].set(translation)
    return T


def _apply_transform_jax(points, transform):
    R = transform[:3, :3]
    t = transform[:3, 3]
    return points @ R.T + t


def _np_apply_transform(points, T):
    return points @ T[:3, :3].T + T[:3, 3]


def _np_reference(cfg, output_dict, data_dict):
    overlaps = np.asarray(output_dict['gt_node_corr_overlaps'])
    gt_idx = np.asarray(output_dict['gt_node_corr_indices'])
    masks = overlaps > cfg['acceptance_overlap']
    gi = gt_idx[masks]
    gmap = np.zeros((output_dict['ref_points_c'].shape[0],
                     output_dict['src_points_c'].shape[0]), np.float32)
    gmap[gi[:, 0], gi[:, 1]] = 1.0
    pir = gmap[np.asarray(output_dict['ref_node_corr_indices']),
               np.asarray(output_dict['src_node_corr_indices'])].mean()

    T = np.asarray(data_dict['transform'])
    warped = _np_apply_transform(np.asarray(output_dict['src_corr_points']), T)
    d = np.linalg.norm(np.asarray(output_dict['ref_corr_points']) - warped, axis=1)
    ir = (d < cfg['acceptance_radius']).astype(np.float32).mean()

    Te = np.asarray(output_dict['estimated_transform'])
    trace = np.trace(Te[:3, :3].T @ T[:3, :3])
    x = np.clip(0.5 * (trace - 1.0), -1.0, 1.0)
    rre = 180.0 * np.arccos(x) / math.pi
    rte = np.linalg.norm(T[:3, 3] - Te[:3, 3])
    realign = np.linalg.inv(T) @ Te
    sp = np.asarray(output_dict['src_points'])
    rmse = np.linalg.norm(_np_apply_transform(sp, realign) - sp, axis=1).mean()
    rr = float(rmse < cfg['acceptance_rmse'])
    fmr = float(ir > cfg['fmr_threshold'])
    return {'PIR': pir, 'IR': ir, 'RRE': rre, 'RTE': rte,
            'RMSE': rmse, 'RR': rr, 'FMR': fmr}


if __name__ == "__main__":
    cfg = {
        'acceptance_overlap': 0.1,
        'acceptance_radius': 0.1,
        'acceptance_rmse': 0.2,
        'fmr_threshold': 0.05,
    }

    key = jax.random.PRNGKey(0)
    k = jax.random.split(key, 10)

    NRC, NSC = 24, 20        # coarse node counts (ref / src)
    G, P = 40, 32            # gt node correspondences / predicted node corrs
    NC, NS = 64, 96          # fine correspondences / src points

    ref_points_c = jax.random.normal(k[0], (NRC, 3), jnp.float32)
    src_points_c = jax.random.normal(k[1], (NSC, 3), jnp.float32)
    gt_node_corr_indices = jnp.stack(
        [jax.random.randint(k[2], (G,), 0, NRC, jnp.int32),
         jax.random.randint(k[3], (G,), 0, NSC, jnp.int32)], axis=1)
    gt_node_corr_overlaps = jax.random.uniform(k[4], (G,), jnp.float32, 0.0, 0.6)
    ref_node_corr_indices = jax.random.randint(k[5], (P,), 0, NRC, jnp.int32)
    src_node_corr_indices = jax.random.randint(k[6], (P,), 0, NSC, jnp.int32)

    transform = _make_transform(_rot_z(0.30), jnp.array([0.10, -0.20, 0.05], jnp.float32))
    est_transform = _make_transform(_rot_z(0.32), jnp.array([0.12, -0.19, 0.04], jnp.float32))

    src_corr_points = jax.random.uniform(k[7], (NC, 3), jnp.float32, -1.0, 1.0)
    noise = 0.02 * jax.random.normal(k[8], (NC, 3), jnp.float32)
    offsets = jnp.where((jnp.arange(NC) % 2 == 0)[:, None], 0.0, 0.5)
    ref_corr_points = _apply_transform_jax(src_corr_points, transform) + noise + offsets

    src_points = jax.random.uniform(k[9], (NS, 3), jnp.float32, -1.0, 1.0)

    output_dict = {
        'ref_points_c': ref_points_c,
        'src_points_c': src_points_c,
        'gt_node_corr_indices': gt_node_corr_indices,
        'gt_node_corr_overlaps': gt_node_corr_overlaps,
        'ref_node_corr_indices': ref_node_corr_indices,
        'src_node_corr_indices': src_node_corr_indices,
        'ref_corr_points': ref_corr_points,
        'src_corr_points': src_corr_points,
        'estimated_transform': est_transform,
        'src_points': src_points,
    }
    data_dict = {'transform': transform}

    results = evaluator_forward(cfg, output_dict, data_dict)
    results = jax.block_until_ready(results)

    expected = _np_reference(cfg, output_dict, data_dict)
    for name in ('PIR', 'IR', 'RRE', 'RTE', 'RMSE', 'RR', 'FMR'):
        np.testing.assert_allclose(np.asarray(results[name]), expected[name],
                                   rtol=2e-3, atol=2e-3, err_msg=name)

    print("KERNEL_OK")
</pallas_src>

<mosaic_0001>
module attributes {stable_mosaic.version = 11 : i64} {
  func.func @kernel(%arg0: memref<3x4xf32, #tpu.memory_space<smem>>, %arg1: memref<3x4xf32, #tpu.memory_space<smem>>, %arg2: memref<3x64xf32, #tpu.memory_space<vmem>>, %arg3: memref<3x64xf32, #tpu.memory_space<vmem>>, %arg4: memref<3x96xf32, #tpu.memory_space<vmem>>, %arg5: memref<32x1xi32, #tpu.memory_space<vmem>>, %arg6: memref<1x40xi32, #tpu.memory_space<vmem>>, %arg7: memref<1x8xf32, #tpu.memory_space<vmem>>) attributes {dimension_semantics = [], scalar_prefetch = 0 : i64, scratch_operands = 0 : i64, tpu.core_type = #tpu.core_type<tc>} {
    %c0 = arith.constant 0 : index
    %c0_0 = arith.constant 0 : index
    %0 = vector.load %arg3[%c0, %c0_0] : memref<3x64xf32, #tpu.memory_space<vmem>>, vector<1x64xf32>
    %c1 = arith.constant 1 : index
    %c0_1 = arith.constant 0 : index
    %1 = vector.load %arg3[%c1, %c0_1] : memref<3x64xf32, #tpu.memory_space<vmem>>, vector<1x64xf32>
    %c2 = arith.constant 2 : index
    %c0_2 = arith.constant 0 : index
    %2 = vector.load %arg3[%c2, %c0_2] : memref<3x64xf32, #tpu.memory_space<vmem>>, vector<1x64xf32>
    %c0_3 = arith.constant 0 : index
    %c0_4 = arith.constant 0 : index
    %3 = vector.load %arg2[%c0_3, %c0_4] : memref<3x64xf32, #tpu.memory_space<vmem>>, vector<1x64xf32>
    %c0_5 = arith.constant 0 : index
    %c0_6 = arith.constant 0 : index
    %4 = memref.load %arg0[%c0_5, %c0_6] : memref<3x4xf32, #tpu.memory_space<smem>>
    %5 = vector.broadcast %4 : f32 to vector<1x64xf32>
    %6 = arith.mulf %5, %0 : vector<1x64xf32>
    %c0_7 = arith.constant 0 : index
    %c1_8 = arith.constant 1 : index
    %7 = memref.load %arg0[%c0_7, %c1_8] : memref<3x4xf32, #tpu.memory_space<smem>>
    %8 = vector.broadcast %7 : f32 to vector<1x64xf32>
    %9 = arith.mulf %8, %1 : vector<1x64xf32>
    %10 = arith.addf %6, %9 : vector<1x64xf32>
    %c0_9 = arith.constant 0 : index
    %c2_10 = arith.constant 2 : index
    %11 = memref.load %arg0[%c0_9, %c2_10] : memref<3x4xf32, #tpu.memory_space<smem>>
    %12 = vector.broadcast %11 : f32 to vector<1x64xf32>
    %13 = arith.mulf %12, %2 : vector<1x64xf32>
    %14 = arith.addf %10, %13 : vector<1x64xf32>
    %c0_11 = arith.constant 0 : index
    %c3 = arith.constant 3 : index
    %15 = memref.load %arg0[%c0_11, %c3] : memref<3x4xf32, #tpu.memory_space<smem>>
    %16 = vector.broadcast %15 : f32 to vector<1x64xf32>
    %17 = arith.addf %14, %16 : vector<1x64xf32>
    %18 = arith.subf %3, %17 : vector<1x64xf32>
    %c1_12 = arith.constant 1 : index
    %c0_13 = arith.constant 0 : index
    %19 = vector.load %arg2[%c1_12, %c0_13] : memref<3x64xf32, #tpu.memory_space<vmem>>, vector<1x64xf32>
    %c1_14 = arith.constant 1 : index
    %c0_15 = arith.constant 0 : index
    %20 = memref.load %arg0[%c1_14, %c0_15] : memref<3x4xf32, #tpu.memory_space<smem>>
    %21 = vector.broadcast %20 : f32 to vector<1x64xf32>
    %22 = arith.mulf %21, %0 : vector<1x64xf32>
    %c1_16 = arith.constant 1 : index
    %c1_17 = arith.constant 1 : index
    %23 = memref.load %arg0[%c1_16, %c1_17] : memref<3x4xf32, #tpu.memory_space<smem>>
    %24 = vector.broadcast %23 : f32 to vector<1x64xf32>
    %25 = arith.mulf %24, %1 : vector<1x64xf32>
    %26 = arith.addf %22, %25 : vector<1x64xf32>
    %c1_18 = arith.constant 1 : index
    %c2_19 = arith.constant 2 : index
    %27 = memref.load %arg0[%c1_18, %c2_19] : memref<3x4xf32, #tpu.memory_space<smem>>
    %28 = vector.broadcast %27 : f32 to vector<1x64xf32>
    %29 = arith.mulf %28, %2 : vector<1x64xf32>
    %30 = arith.addf %26, %29 : vector<1x64xf32>
    %c1_20 = arith.constant 1 : index
    %c3_21 = arith.constant 3 : index
    %31 = memref.load %arg0[%c1_20, %c3_21] : memref<3x4xf32, #tpu.memory_space<smem>>
    %32 = vector.broadcast %31 : f32 to vector<1x64xf32>
    %33 = arith.addf %30, %32 : vector<1x64xf32>
    %34 = arith.subf %19, %33 : vector<1x64xf32>
    %c2_22 = arith.constant 2 : index
    %c0_23 = arith.constant 0 : index
    %35 = vector.load %arg2[%c2_22, %c0_23] : memref<3x64xf32, #tpu.memory_space<vmem>>, vector<1x64xf32>
    %c2_24 = arith.constant 2 : index
    %c0_25 = arith.constant 0 : index
    %36 = memref.load %arg0[%c2_24, %c0_25] : memref<3x4xf32, #tpu.memory_space<smem>>
    %37 = vector.broadcast %36 : f32 to vector<1x64xf32>
    %38 = arith.mulf %37, %0 : vector<1x64xf32>
    %c2_26 = arith.constant 2 : index
    %c1_27 = arith.constant 1 : index
    %39 = memref.load %arg0[%c2_26, %c1_27] : memref<3x4xf32, #tpu.memory_space<smem>>
    %40 = vector.broadcast %39 : f32 to vector<1x64xf32>
    %41 = arith.mulf %40, %1 : vector<1x64xf32>
    %42 = arith.addf %38, %41 : vector<1x64xf32>
    %c2_28 = arith.constant 2 : index
    %c2_29 = arith.constant 2 : index
    %43 = memref.load %arg0[%c2_28, %c2_29] : memref<3x4xf32, #tpu.memory_space<smem>>
    %44 = vector.broadcast %43 : f32 to vector<1x64xf32>
    %45 = arith.mulf %44, %2 : vector<1x64xf32>
    %46 = arith.addf %42, %45 : vector<1x64xf32>
    %c2_30 = arith.constant 2 : index
    %c3_31 = arith.constant 3 : index
    %47 = memref.load %arg0[%c2_30, %c3_31] : memref<3x4xf32, #tpu.memory_space<smem>>
    %48 = vector.broadcast %47 : f32 to vector<1x64xf32>
    %49 = arith.addf %46, %48 : vector<1x64xf32>
    %50 = arith.subf %35, %49 : vector<1x64xf32>
    %51 = arith.mulf %18, %18 : vector<1x64xf32>
    %52 = arith.mulf %34, %34 : vector<1x64xf32>
    %53 = arith.addf %51, %52 : vector<1x64xf32>
    %54 = arith.mulf %50, %50 : vector<1x64xf32>
    %55 = arith.addf %53, %54 : vector<1x64xf32>
    %cst = arith.constant 0.00999999977 : f32
    %56 = vector.broadcast %cst : f32 to vector<1x64xf32>
    %57 = arith.cmpf olt, %55, %56 : vector<1x64xf32>
    %cst_32 = arith.constant 1.000000e+00 : f32
    %cst_33 = arith.constant 0.000000e+00 : f32
    %58 = vector.broadcast %cst_32 : f32 to vector<1x64xf32>
    %59 = vector.broadcast %cst_33 : f32 to vector<1x64xf32>
    %60 = arith.select %57, %58, %59 : vector<1x64xi1>, vector<1x64xf32>
    %cst_34 = arith.constant dense<0.000000e+00> : vector<1xf32>
    %61 = vector.multi_reduction <add>, %60, %cst_34 [1] : vector<1x64xf32> to vector<1xf32>
    %62 = vector.shape_cast %61 : vector<1xf32> to vector<1x1xf32>
    %cst_35 = arith.constant 1.562500e-02 : f32
    %63 = vector.broadcast %cst_35 : f32 to vector<1x1xf32>
    %64 = arith.mulf %62, %63 : vector<1x1xf32>
    %c0_36 = arith.constant 0 : index
    %c0_37 = arith.constant 0 : index
    %65 = vector.load %arg4[%c0_36, %c0_37] : memref<3x96xf32, #tpu.memory_space<vmem>>, vector<1x96xf32>
    %c1_38 = arith.constant 1 : index
    %c0_39 = arith.constant 0 : index
    %66 = vector.load %arg4[%c1_38, %c0_39] : memref<3x96xf32, #tpu.memory_space<vmem>>, vector<1x96xf32>
    %c2_40 = arith.constant 2 : index
    %c0_41 = arith.constant 0 : index
    %67 = vector.load %arg4[%c2_40, %c0_41] : memref<3x96xf32, #tpu.memory_space<vmem>>, vector<1x96xf32>
    %c0_42 = arith.constant 0 : index
    %c0_43 = arith.constant 0 : index
    %68 = vector.load %arg4[%c0_42, %c0_43] : memref<3x96xf32, #tpu.memory_space<vmem>>, vector<1x96xf32>
    %c0_44 = arith.constant 0 : index
    %c0_45 = arith.constant 0 : index
    %69 = memref.load %arg1[%c0_44, %c0_45] : memref<3x4xf32, #tpu.memory_space<smem>>
    %70 = vector.broadcast %69 : f32 to vector<1x96xf32>
    %71 = arith.mulf %70, %65 : vector<1x96xf32>
    %c0_46 = arith.constant 0 : index
    %c1_47 = arith.constant 1 : index
    %72 = memref.load %arg1[%c0_46, %c1_47] : memref<3x4xf32, #tpu.memory_space<smem>>
    %73 = vector.broadcast %72 : f32 to vector<1x96xf32>
    %74 = arith.mulf %73, %66 : vector<1x96xf32>
    %75 = arith.addf %71, %74 : vector<1x96xf32>
    %c0_48 = arith.constant 0 : index
    %c2_49 = arith.constant 2 : index
    %76 = memref.load %arg1[%c0_48, %c2_49] : memref<3x4xf32, #tpu.memory_space<smem>>
    %77 = vector.broadcast %76 : f32 to vector<1x96xf32>
    %78 = arith.mulf %77, %67 : vector<1x96xf32>
    %79 = arith.addf %75, %78 : vector<1x96xf32>
    %c0_50 = arith.constant 0 : index
    %c3_51 = arith.constant 3 : index
    %80 = memref.load %arg1[%c0_50, %c3_51] : memref<3x4xf32, #tpu.memory_space<smem>>
    %81 = vector.broadcast %80 : f32 to vector<1x96xf32>
    %82 = arith.addf %79, %81 : vector<1x96xf32>
    %83 = arith.subf %68, %82 : vector<1x96xf32>
    %c1_52 = arith.constant 1 : index
    %c0_53 = arith.constant 0 : index
    %84 = vector.load %arg4[%c1_52, %c0_53] : memref<3x96xf32, #tpu.memory_space<vmem>>, vector<1x96xf32>
    %c1_54 = arith.constant 1 : index
    %c0_55 = arith.constant 0 : index
    %85 = memref.load %arg1[%c1_54, %c0_55] : memref<3x4xf32, #tpu.memory_space<smem>>
    %86 = vector.broadcast %85 : f32 to vector<1x96xf32>
    %87 = arith.mulf %86, %65 : vector<1x96xf32>
    %c1_56 = arith.constant 1 : index
    %c1_57 = arith.constant 1 : index
    %88 = memref.load %arg1[%c1_56, %c1_57] : memref<3x4xf32, #tpu.memory_space<smem>>
    %89 = vector.broadcast %88 : f32 to vector<1x96xf32>
    %90 = arith.mulf %89, %66 : vector<1x96xf32>
    %91 = arith.addf %87, %90 : vector<1x96xf32>
    %c1_58 = arith.constant 1 : index
    %c2_59 = arith.constant 2 : index
    %92 = memref.load %arg1[%c1_58, %c2_59] : memref<3x4xf32, #tpu.memory_space<smem>>
    %93 = vector.broadcast %92 : f32 to vector<1x96xf32>
    %94 = arith.mulf %93, %67 : vector<1x96xf32>
    %95 = arith.addf %91, %94 : vector<1x96xf32>
    %c1_60 = arith.constant 1 : index
    %c3_61 = arith.constant 3 : index
    %96 = memref.load %arg1[%c1_60, %c3_61] : memref<3x4xf32, #tpu.memory_space<smem>>
    %97 = vector.broadcast %96 : f32 to vector<1x96xf32>
    %98 = arith.addf %95, %97 : vector<1x96xf32>
    %99 = arith.subf %84, %98 : vector<1x96xf32>
    %c2_62 = arith.constant 2 : index
    %c0_63 = arith.constant 0 : index
    %100 = vector.load %arg4[%c2_62, %c0_63] : memref<3x96xf32, #tpu.memory_space<vmem>>, vector<1x96xf32>
    %c2_64 = arith.constant 2 : index
    %c0_65 = arith.constant 0 : index
    %101 = memref.load %arg1[%c2_64, %c0_65] : memref<3x4xf32, #tpu.memory_space<smem>>
    %102 = vector.broadcast %101 : f32 to vector<1x96xf32>
    %103 = arith.mulf %102, %65 : vector<1x96xf32>
    %c2_66 = arith.constant 2 : index
    %c1_67 = arith.constant 1 : index
    %104 = memref.load %arg1[%c2_66, %c1_67] : memref<3x4xf32, #tpu.memory_space<smem>>
    %105 = vector.broadcast %104 : f32 to vector<1x96xf32>
    %106 = arith.mulf %105, %66 : vector<1x96xf32>
    %107 = arith.addf %103, %106 : vector<1x96xf32>
    %c2_68 = arith.constant 2 : index
    %c2_69 = arith.constant 2 : index
    %108 = memref.load %arg1[%c2_68, %c2_69] : memref<3x4xf32, #tpu.memory_space<smem>>
    %109 = vector.broadcast %108 : f32 to vector<1x96xf32>
    %110 = arith.mulf %109, %67 : vector<1x96xf32>
    %111 = arith.addf %107, %110 : vector<1x96xf32>
    %c2_70 = arith.constant 2 : index
    %c3_71 = arith.constant 3 : index
    %112 = memref.load %arg1[%c2_70, %c3_71] : memref<3x4xf32, #tpu.memory_space<smem>>
    %113 = vector.broadcast %112 : f32 to vector<1x96xf32>
    %114 = arith.addf %111, %113 : vector<1x96xf32>
    %115 = arith.subf %100, %114 : vector<1x96xf32>
    %116 = arith.mulf %83, %83 : vector<1x96xf32>
    %117 = arith.mulf %99, %99 : vector<1x96xf32>
    %118 = arith.addf %116, %117 : vector<1x96xf32>
    %119 = arith.mulf %115, %115 : vector<1x96xf32>
    %120 = arith.addf %118, %119 : vector<1x96xf32>
    %121 = math.sqrt %120 : vector<1x96xf32>
    %cst_72 = arith.constant dense<0.000000e+00> : vector<1xf32>
    %122 = vector.multi_reduction <add>, %121, %cst_72 [1] : vector<1x96xf32> to vector<1xf32>
    %123 = vector.shape_cast %122 : vector<1xf32> to vector<1x1xf32>
    %cst_73 = arith.constant 0.010416667 : f32
    %124 = vector.broadcast %cst_73 : f32 to vector<1x1xf32>
    %125 = arith.mulf %123, %124 : vector<1x1xf32>
    %c0_74 = arith.constant 0 : index
    %c0_75 = arith.constant 0 : index
    %126 = vector.load %arg5[%c0_74, %c0_75] : memref<32x1xi32, #tpu.memory_space<vmem>>, vector<32x1xi32>
    %c0_76 = arith.constant 0 : index
    %c0_77 = arith.constant 0 : index
    %127 = vector.load %arg6[%c0_76, %c0_77] : memref<1x40xi32, #tpu.memory_space<vmem>>, vector<1x40xi32>
    %128 = vector.broadcast %126 : vector<32x1xi32> to vector<32x40xi32>
    %129 = vector.broadcast %127 : vector<1x40xi32> to vector<32x40xi32>
    %130 = arith.cmpi eq, %128, %129 : vector<32x40xi32>
    %131 = arith.extui %130 : vector<32x40xi1> to vector<32x40xi32>
    %cst_78 = arith.constant dense<-2147483648> : vector<32xi32>
    %132 = vector.multi_reduction <maxsi>, %131, %cst_78 [1] : vector<32x40xi32> to vector<32xi32>
    %133 = vector.shape_cast %132 : vector<32xi32> to vector<32x1xi32>
    %134 = arith.sitofp %133 : vector<32x1xi32> to vector<32x1xf32>
    %cst_79 = arith.constant dense<0.000000e+00> : vector<1xf32>
    %135 = vector.multi_reduction <add>, %134, %cst_79 [0] : vector<32x1xf32> to vector<1xf32>
    %136 = vector.shape_cast %135 : vector<1xf32> to vector<1x1xf32>
    %cst_80 = arith.constant 3.125000e-02 : f32
    %137 = vector.broadcast %cst_80 : f32 to vector<1x1xf32>
    %138 = arith.mulf %136, %137 : vector<1x1xf32>
    %cst_81 = arith.constant 2.000000e-01 : f32
    %139 = vector.broadcast %cst_81 : f32 to vector<1x1xf32>
    %140 = arith.cmpf olt, %125, %139 : vector<1x1xf32>
    %cst_82 = arith.constant 1.000000e+00 : f32
    %cst_83 = arith.constant 0.000000e+00 : f32
    %141 = vector.broadcast %cst_82 : f32 to vector<1x1xf32>
    %142 = vector.broadcast %cst_83 : f32 to vector<1x1xf32>
    %143 = arith.select %140, %141, %142 : vector<1x1xi1>, vector<1x1xf32>
    %cst_84 = arith.constant 5.000000e-02 : f32
    %144 = vector.broadcast %cst_84 : f32 to vector<1x1xf32>
    %145 = arith.cmpf ogt, %64, %144 : vector<1x1xf32>
    %cst_85 = arith.constant 1.000000e+00 : f32
    %cst_86 = arith.constant 0.000000e+00 : f32
    %146 = vector.broadcast %cst_85 : f32 to vector<1x1xf32>
    %147 = vector.broadcast %cst_86 : f32 to vector<1x1xf32>
    %148 = arith.select %145, %146, %147 : vector<1x1xi1>, vector<1x1xf32>
    %c0_87 = arith.constant 0 : index
    %c0_88 = arith.constant 0 : index
    %149 = vector.load %arg7[%c0_87, %c0_88] : memref<1x8xf32, #tpu.memory_space<vmem>>, vector<1x1xf32>
    tpu.vector_store %arg7[%c0_87, %c0_88], %64 {strides = array<i32>} : memref<1x8xf32, #tpu.memory_space<vmem>>, vector<1x1xf32>,
    %c0_89 = arith.constant 0 : index
    %c1_90 = arith.constant 1 : index
    %150 = vector.load %arg7[%c0_89, %c1_90] : memref<1x8xf32, #tpu.memory_space<vmem>>, vector<1x1xf32>
    tpu.vector_store %arg7[%c0_89, %c1_90], %125 {strides = array<i32>} : memref<1x8xf32, #tpu.memory_space<vmem>>, vector<1x1xf32>,
    %c0_91 = arith.constant 0 : index
    %c2_92 = arith.constant 2 : index
    %151 = vector.load %arg7[%c0_91, %c2_92] : memref<1x8xf32, #tpu.memory_space<vmem>>, vector<1x1xf32>
    tpu.vector_store %arg7[%c0_91, %c2_92], %138 {strides = array<i32>} : memref<1x8xf32, #tpu.memory_space<vmem>>, vector<1x1xf32>,
    %c0_93 = arith.constant 0 : index
    %c3_94 = arith.constant 3 : index
    %152 = vector.load %arg7[%c0_93, %c3_94] : memref<1x8xf32, #tpu.memory_space<vmem>>, vector<1x1xf32>
    tpu.vector_store %arg7[%c0_93, %c3_94], %143 {strides = array<i32>} : memref<1x8xf32, #tpu.memory_space<vmem>>, vector<1x1xf32>,
    %c0_95 = arith.constant 0 : index
    %c4 = arith.constant 4 : index
    %153 = vector.load %arg7[%c0_95, %c4] : memref<1x8xf32, #tpu.memory_space<vmem>>, vector<1x1xf32>
    tpu.vector_store %arg7[%c0_95, %c4], %148 {strides = array<i32>} : memref<1x8xf32, #tpu.memory_space<vmem>>, vector<1x1xf32>,
    %cst_96 = arith.constant 0.000000e+00 : f32
    %154 = vector.broadcast %cst_96 : f32 to vector<1x3xf32>
    %c0_97 = arith.constant 0 : index
    %c5 = arith.constant 5 : index
    %155 = vector.load %arg7[%c0_97, %c5] : memref<1x8xf32, #tpu.memory_space<vmem>>, vector<1x3xf32>
    tpu.vector_store %arg7[%c0_97, %c5], %154 {strides = array<i32>} : memref<1x8xf32, #tpu.memory_space<vmem>>, vector<1x3xf32>,
    return
  }
}

</mosaic_0001>

<llo_original>
// kernel: tpu_custom_call.1
$region0: #{tpu_custom_call.1}
  #allocation0 [shape = 'u32[]', space=smem, size = 0x4, offset = 0x4, fixed_abs, tag = 'smem constant byte address 0x4 - core index']
  #allocation1 [shape = 'u32[144,128]{1,0:T(1,128)}', space=vmem, size = 0x12000, scoped, tag = 'internal scratch']
  %s0 = inlined_call_operand.vmem [shape: f32[3,4], index: 0, kind: input, shape index: {}]
  %s1 = inlined_call_operand.vmem [shape: f32[3,4], index: 1, kind: input, shape index: {}]
  %s2 = inlined_call_operand.vmem [shape: f32[3,64], index: 2, kind: input, shape index: {}]
  %s3 = inlined_call_operand.vmem [shape: f32[3,64], index: 3, kind: input, shape index: {}]
  %s4 = inlined_call_operand.vmem [shape: f32[3,96], index: 4, kind: input, shape index: {}]
  %s5 = inlined_call_operand.vmem [shape: s32[32,1], index: 5, kind: input, shape index: {}]
  %s6 = inlined_call_operand.vmem [shape: s32[1,40], index: 6, kind: input, shape index: {}]
  %s7 = inlined_call_operand.hbm [shape: f32[1,8], index: 7, kind: output, shape index: {}]
  %s8 = sld [smem:[#allocation0]]
  $region46: #{tpu_custom_call.1} parent=0
    _
  %s10 = ssub.s32 1, %s8
  %s11 = scalar_select 0, %s10, %s8
  $region1: #{tpu_custom_call.1} parent=0
    #allocation2 [shape = 'u8[2048]{0}', space=smem, size = 0x800, scoped, tag = 'input window, operand 0, single buffered']
    #allocation3 [shape = 's32[1]{0}', space=sflag, size = 0x4, scoped, tag = 'scoped memory for tpu_custom_call.1']
    #allocation4 [shape = 's32[1]{0}', space=sflag, size = 0x4, scoped, tag = 'scoped memory for tpu_custom_call.1']
    #allocation5 [shape = 'u8[2048]{0}', space=smem, size = 0x800, scoped, tag = 'input window, operand 1, single buffered']
    #allocation6 [shape = 's32[1]{0}', space=sflag, size = 0x4, scoped, tag = 'scoped memory for tpu_custom_call.1']
    #allocation7 [shape = 'u8[512]{0}', space=vmem, size = 0x400, scoped, tag = 'output window, operand 0, single buffered']
    %12 = vsyncpa [#allocation4], 0
    %13 = vsyncpa [#allocation6], 0
    %14 = vsyncpa [#allocation3], 0
    // Predicated region
    $region2: #{tpu_custom_call.1} parent=1 // pred_check
      _
    $region3: #{tpu_custom_call.1} parent=1 // pred_check_branch
      %16 = sbr.rel (0) target = $region5
    $region4: #{tpu_custom_call.1} parent=1 // pred_region
      %s18 = ssub.s32 64, 64
      %19 = vsyncadd [#allocation4], %s18
      %s21 = sshll.u32 %s0, 4
      %s22 = int_to_ptr.vmem [resolvable:$true] %s21
      %24 = dma.vmem_to_smem %s22, 64, [#allocation2], [#allocation4]
    $region5: #{tpu_custom_call.1} parent=1 // pred_fallthru
      _
    // Predicated region
    $region6: #{tpu_custom_call.1} parent=1 // pred_check
      _
    $region7: #{tpu_custom_call.1} parent=1 // pred_check_branch
      %26 = sbr.rel (0) target = $region9
    $region8: #{tpu_custom_call.1} parent=1 // pred_region
      %s28 = ssub.s32 64, 64
      %29 = vsyncadd [#allocation6], %s28
      %s31 = sshll.u32 %s1, 4
      %s32 = int_to_ptr.vmem [resolvable:$true] %s31
      %34 = dma.vmem_to_smem %s32, 64, [#allocation5], [#allocation6]
    $region9: #{tpu_custom_call.1} parent=1 // pred_fallthru
      _
    // Predicated region
    $region10: #{tpu_custom_call.1} parent=1 // pred_check
      _
    $region11: #{tpu_custom_call.1} parent=1 // pred_check_branch
      %36 = sbr.rel (0) target = $region13
    $region12: #{tpu_custom_call.1} parent=1 // pred_region
      _
    $region13: #{tpu_custom_call.1} parent=1 // pred_fallthru
      _
    // Predicated region
    $region14: #{tpu_custom_call.1} parent=1 // pred_check
      _
    $region15: #{tpu_custom_call.1} parent=1 // pred_check_branch
      %38 = sbr.rel (0) target = $region17
    $region16: #{tpu_custom_call.1} parent=1 // pred_region
      _
    $region17: #{tpu_custom_call.1} parent=1 // pred_fallthru
      _
    // Predicated region
    $region18: #{tpu_custom_call.1} parent=1 // pred_check
      _
    $region19: #{tpu_custom_call.1} parent=1 // pred_check_branch
      %40 = sbr.rel (0) target = $region21
    $region20: #{tpu_custom_call.1} parent=1 // pred_region
      _
    $region21: #{tpu_custom_call.1} parent=1 // pred_fallthru
      _
    // Predicated region
    $region22: #{tpu_custom_call.1} parent=1 // pred_check
      _
    $region23: #{tpu_custom_call.1} parent=1 // pred_check_branch
      %42 = sbr.rel (0) target = $region25
    $region24: #{tpu_custom_call.1} parent=1 // pred_region
      _
    $region25: #{tpu_custom_call.1} parent=1 // pred_fallthru
      _
    // Predicated region
    $region26: #{tpu_custom_call.1} parent=1 // pred_check
      _
    $region27: #{tpu_custom_call.1} parent=1 // pred_check_branch
      %44 = sbr.rel (0) target = $region29
    $region28: #{tpu_custom_call.1} parent=1 // pred_region
      _
    $region29: #{tpu_custom_call.1} parent=1 // pred_fallthru
      _
    // Predicated region
    $region30: #{tpu_custom_call.1} parent=1 // pred_check
      _
    $region31: #{tpu_custom_call.1} parent=1 // pred_check_branch
      %46 = sbr.rel (0) target = $region33
    $region32: #{tpu_custom_call.1} parent=1 // pred_region
      %47 = dma.done [#allocation4], 64
    $region33: #{tpu_custom_call.1} parent=1 // pred_fallthru
      _
    // Predicated region
    $region34: #{tpu_custom_call.1} parent=1 // pred_check
      _
    $region35: #{tpu_custom_call.1} parent=1 // pred_check_branch
      %49 = sbr.rel (0) target = $region37
    $region36: #{tpu_custom_call.1} parent=1 // pred_region
      %50 = dma.done [#allocation6], 64
    $region37: #{tpu_custom_call.1} parent=1 // pred_fallthru
      _
    %51 = sfence
    %v52 = vld [vmem:[%s3] sm:$0x1]
    %v53 = vld [vmem:[%s3 + $0x1] sm:$0x1]
    %v54 = vld [vmem:[%s3 + $0x2] sm:$0x1]
    %v55 = vld [vmem:[%s2] sm:$0x1]
    %s56 = sld [smem:[#allocation2]]
    %v57 = vstv %s56
    %v58 = vmul.f32 %v57, %v52
    %s59 = sld [smem:[#allocation2 + $0x1]]
    %v60 = vstv %s59
    %v61 = vmul.f32 %v60, %v53
    %v62 = vadd.f32 %v58, %v61
    %s63 = sld [smem:[#allocation2 + $0x2]]
    %v64 = vstv %s63
    %v65 = vmul.f32 %v64, %v54
    %v66 = vadd.f32 %v62, %v65
    %s67 = sld [smem:[#allocation2 + $0x3]]
    %v68 = vstv %s67
    %v69 = vadd.f32 %v66, %v68
    %v70 = vsub.f32 %v55, %v69
    %v71 = vld [vmem:[%s2 + $0x1] sm:$0x1]
    %s72 = sld [smem:[#allocation2 + $0x80]]
    %v73 = vstv %s72
    %v74 = vmul.f32 %v73, %v52
    %s75 = sld [smem:[#allocation2 + $0x81]]
    %v76 = vstv %s75
    %v77 = vmul.f32 %v76, %v53
    %v78 = vadd.f32 %v74, %v77
    %s79 = sld [smem:[#allocation2 + $0x82]]
    %v80 = vstv %s79
    %v81 = vmul.f32 %v80, %v54
    %v82 = vadd.f32 %v78, %v81
    %s83 = sld [smem:[#allocation2 + $0x83]]
    %v84 = vstv %s83
    %v85 = vadd.f32 %v82, %v84
    %v86 = vsub.f32 %v71, %v85
    %v87 = vld [vmem:[%s2 + $0x2] sm:$0x1]
    %s88 = sld [smem:[#allocation2 + $0x100]]
    %v89 = vstv %s88
    %v90 = vmul.f32 %v89, %v52
    %s91 = sld [smem:[#allocation2 + $0x101]]
    %v92 = vstv %s91
    %v93 = vmul.f32 %v92, %v53
    %v94 = vadd.f32 %v90, %v93
    %s95 = sld [smem:[#allocation2 + $0x102]]
    %v96 = vstv %s95
    %v97 = vmul.f32 %v96, %v54
    %v98 = vadd.f32 %v94, %v97
    %s99 = sld [smem:[#allocation2 + $0x103]]
    %v100 = vstv %s99
    %v101 = vadd.f32 %v98, %v100
    %v102 = vsub.f32 %v87, %v101
    %v103 = vmul.f32 %v70, %v70
    %v104 = vmul.f32 %v86, %v86
    %v105 = vadd.f32 %v103, %v104
    %v106 = vmul.f32 %v102, %v102
    %v107 = vadd.f32 %v105, %v106
    %vm108 = vcmp.lt.f32.partialorder %v107, 0.01
    %v109 = vsel %vm108, 1.0, 0.0
    %vm110 = vcmask 516096
    %v111 = vsel %vm110, %v109, 0.0
    %112 = vadd.xlane.f32.xlu0 %v111
    %v113 = vpop.xlane.xlu0 %112
    %v114 = vmul.f32 %v113, 0.015625
    %v115 = vld [vmem:[%s4] sm:$0x1]
    %v116 = vld [vmem:[%s4 + $0x1] sm:$0x1]
    %v117 = vld [vmem:[%s4 + $0x2] sm:$0x1]
    %s118 = sld [smem:[#allocation5]]
    %v119 = vstv %s118
    %v120 = vmul.f32 %v119, %v115
    %s121 = sld [smem:[#allocation5 + $0x1]]
    %v122 = vstv %s121
    %v123 = vmul.f32 %v122, %v116
    %v124 = vadd.f32 %v120, %v123
    %s125 = sld [smem:[#allocation5 + $0x2]]
    %v126 = vstv %s125
    %v127 = vmul.f32 %v126, %v117
    %v128 = vadd.f32 %v124, %v127
    %s129 = sld [smem:[#allocation5 + $0x3]]
    %v130 = vstv %s129
    %v131 = vadd.f32 %v128, %v130
    %v132 = vsub.f32 %v115, %v131
    %s133 = sld [smem:[#allocation5 + $0x80]]
    %v134 = vstv %s133
    %v135 = vmul.f32 %v134, %v115
    %s136 = sld [smem:[#allocation5 + $0x81]]
    %v137 = vstv %s136
    %v138 = vmul.f32 %v137, %v116
    %v139 = vadd.f32 %v135, %v138
    %s140 = sld [smem:[#allocation5 + $0x82]]
    %v141 = vstv %s140
    %v142 = vmul.f32 %v141, %v117
    %v143 = vadd.f32 %v139, %v142
    %s144 = sld [smem:[#allocation5 + $0x83]]
    %v145 = vstv %s144
    %v146 = vadd.f32 %v143, %v145
    %v147 = vsub.f32 %v116, %v146
    %s148 = sld [smem:[#allocation5 + $0x100]]
    %v149 = vstv %s148
    %v150 = vmul.f32 %v149, %v115
    %s151 = sld [smem:[#allocation5 + $0x101]]
    %v152 = vstv %s151
    %v153 = vmul.f32 %v152, %v116
    %v154 = vadd.f32 %v150, %v153
    %s155 = sld [smem:[#allocation5 + $0x102]]
    %v156 = vstv %s155
    %v157 = vmul.f32 %v156, %v117
    %v158 = vadd.f32 %v154, %v157
    %s159 = sld [smem:[#allocation5 + $0x103]]
    %v160 = vstv %s159
    %v161 = vadd.f32 %v158, %v160
    %v162 = vsub.f32 %v117, %v161
    %v163 = vmul.f32 %v132, %v132
    %v164 = vmul.f32 %v147, %v147
    %v165 = vadd.f32 %v163, %v164
    %v166 = vmul.f32 %v162, %v162
    %v167 = vadd.f32 %v165, %v166
    %v168 = vrsqrt.pop %v167
    %v169 = vmul.f32 %v167, %v168
    %vm170 = vcmp.eq.f32.partialorder %v167, inf
    %v171 = vsel %vm170, %v167, %v169
    %vm172 = vcmp.eq.f32.partialorder %v167, 0.0
    %v173 = vand.u32 %v167, 2147483648
    %v174 = vsel %vm172, %v173, %v171
    %vm175 = vcmask 778240
    %v176 = vsel %vm175, %v174, 0.0
    %177 = vadd.xlane.f32.xlu0 %v176
    %v178 = vpop.xlane.xlu0 %177
    %v179 = vmul.f32 %v178, 0.010416667
    %v180 = vld [vmem:[%s5] sm:$0xff]
    %v181 = vld [vmem:[%s5 + $0x8] sm:$0xff]
    %v182 = vld [vmem:[%s5 + $0x10] sm:$0xff]
    %v183 = vld [vmem:[%s5 + $0x18] sm:$0xff]
    %v184 = vld [vmem:[%s6] sm:$0x1]
    %185 = vset.pattern.permute.xlu0 0
    %186 = vperm.xlu0 %185, %v180
    %v187 = vpop.permute.xlu0 %186
    %188 = vset.pattern.permute.xlu0 0
    %189 = vperm.xlu0 %188, %v181
    %v190 = vpop.permute.xlu0 %189
    %191 = vset.pattern.permute.xlu0 0
    %192 = vperm.xlu0 %191, %v182
    %v193 = vpop.permute.xlu0 %192
    %194 = vset.pattern.permute.xlu0 0
    %195 = vperm.xlu0 %194, %v183
    %v196 = vpop.permute.xlu0 %195
    %v197 = vlaneseq
    %v198 = vshrl.u32 %v197, 7
    %v199 = vsub.s32 0, %v198
    %v200 = vrot.slane %v184, %v199
    %vm201 = vcmp.eq.s32.totalorder %v187, %v200
    %vm202 = vcmp.eq.s32.totalorder %v190, %v200
    %vm203 = vcmp.eq.s32.totalorder %v193, %v200
    %vm204 = vcmp.eq.s32.totalorder %v196, %v200
    %v205 = vsel %vm201, 1, 0
    %v206 = vsel %vm202, 1, 0
    %v207 = vsel %vm203, 1, 0
    %v208 = vsel %vm204, 1, 0
    %vm209 = vcmask 326656
    %v210 = vsel %vm209, %v205, 2147483648
    %v211 = vand.u32 %v210, 65535
    %v212 = vshra.s32 %v210, 16
    %v213 = vcvt.s32.f32 %v211
    %v214 = vcvt.s32.f32 %v212
    %215 = vmax.xlane.f32.xlu0 %v214
    %v216 = vpop.xlane.xlu0 %215
    %vm217 = vcmp.eq.f32.partialorder %v214, %v216
    %v218 = vsel %vm217, %v213, -inf
    %219 = vmax.xlane.f32.xlu0 %v218
    %v220 = vpop.xlane.xlu0 %219
    %v221 = vcvt.f32.s32 %v220
    %v222 = vcvt.f32.s32 %v216
    %v223 = vshll.u32 %v222, 16
    %v224 = vadd.s32 %v223, %v221
    %v225 = vsel %vm209, %v206, 2147483648
    %v226 = vand.u32 %v225, 65535
    %v227 = vshra.s32 %v225, 16
    %v228 = vcvt.s32.f32 %v226
    %v229 = vcvt.s32.f32 %v227
    %230 = vmax.xlane.f32.xlu0 %v229
    %v231 = vpop.xlane.xlu0 %230
    %vm232 = vcmp.eq.f32.partialorder %v229, %v231
    %v233 = vsel %vm232, %v228, -inf
    %234 = vmax.xlane.f32.xlu0 %v233
    %v235 = vpop.xlane.xlu0 %234
    %v236 = vcvt.f32.s32 %v235
    %v237 = vcvt.f32.s32 %v231
    %v238 = vshll.u32 %v237, 16
    %v239 = vadd.s32 %v238, %v236
    %v240 = vsel %vm209, %v207, 2147483648
    %v241 = vand.u32 %v240, 65535
    %v242 = vshra.s32 %v240, 16
    %v243 = vcvt.s32.f32 %v241
    %v244 = vcvt.s32.f32 %v242
    %245 = vmax.xlane.f32.xlu0 %v244
    %v246 = vpop.xlane.xlu0 %245
    %vm247 = vcmp.eq.f32.partialorder %v244, %v246
    %v248 = vsel %vm247, %v243, -inf
    %249 = vmax.xlane.f32.xlu0 %v248
    %v250 = vpop.xlane.xlu0 %249
    %v251 = vcvt.f32.s32 %v250
    %v252 = vcvt.f32.s32 %v246
    %v253 = vshll.u32 %v252, 16
    %v254 = vadd.s32 %v253, %v251
    %v255 = vsel %vm209, %v208, 2147483648
    %v256 = vand.u32 %v255, 65535
    %v257 = vshra.s32 %v255, 16
    %v258 = vcvt.s32.f32 %v256
    %v259 = vcvt.s32.f32 %v257
    %260 = vmax.xlane.f32.xlu0 %v259
    %v261 = vpop.xlane.xlu0 %260
    %vm262 = vcmp.eq.f32.partialorder %v259, %v261
    %v263 = vsel %vm262, %v258, -inf
    %264 = vmax.xlane.f32.xlu0 %v263
    %v265 = vpop.xlane.xlu0 %264
    %v266 = vcvt.f32.s32 %v265
    %v267 = vcvt.f32.s32 %v261
    %v268 = vshll.u32 %v267, 16
    %v269 = vadd.s32 %v268, %v266
    %v270 = vcvt.s32.f32 %v224
    %v271 = vcvt.s32.f32 %v239
    %v272 = vcvt.s32.f32 %v254
    %v273 = vcvt.s32.f32 %v269
    %v274 = vadd.f32 %v270, %v271
    %v275 = vadd.f32 %v274, %v272
    %v276 = vadd.f32 %v275, %v273
    %v277 = vrot.slane %v276, 4
    %v278 = vadd.f32 %v276, %v277
    %v279 = vrot.slane %v278, 2
    %v280 = vadd.f32 %v278, %v279
    %v281 = vrot.slane %v280, 1
    %v282 = vadd.f32 %v280, %v281
    %v283 = vmul.f32 %v282, 0.03125
    %vm284 = vcmp.lt.f32.partialorder %v179, 0.2
    %v285 = vsel %vm284, 1.0, 0.0
    %vm286 = vcmp.gt.f32.partialorder %v114, 0.05
    %v287 = vsel %vm286, 1.0, 0.0
    %vm288 = vcmask 0
    %289 = vst.msk [vmem:[#allocation7] sm:$0x1] %vm288, %v114
    %vm290 = vcmask 8200
    %291 = vst.msk [vmem:[#allocation7] sm:$0x1] %vm290, %v179
    %vm292 = vcmask 16400
    %293 = vst.msk [vmem:[#allocation7] sm:$0x1] %vm292, %v283
    %vm294 = vcmask 24600
    %295 = vst.msk [vmem:[#allocation7] sm:$0x1] %vm294, %v285
    %vm296 = vcmask 32800
    %297 = vst.msk [vmem:[#allocation7] sm:$0x1] %vm296, %v287
    %vm298 = vcmask 57384
    %299 = vst.msk [vmem:[#allocation7] sm:$0x1] %vm298, 0.0
    // Predicated region
    $region38: #{tpu_custom_call.1} parent=1 // pred_check
      _
    $region39: #{tpu_custom_call.1} parent=1 // pred_check_branch
      %301 = sbr.rel (0) target = $region41
    $region40: #{tpu_custom_call.1} parent=1 // pred_region
      %s303 = ssub.s32 16, 16
      %304 = vsyncadd [#allocation3], %s303
      %s306 = sshll.u32 [#allocation7], 4
      %s307 = int_to_ptr.vmem [resolvable:$true] %s306
      %309 = dma.vmem_to_hbm [thread:$0]  %s307, 16, %s7, [#allocation3]
    $region41: #{tpu_custom_call.1} parent=1 // pred_fallthru
      _
    // Predicated region
    $region42: #{tpu_custom_call.1} parent=1 // pred_check
      _
    $region43: #{tpu_custom_call.1} parent=1 // pred_check_branch
      %311 = sbr.rel (0) target = $region45
    $region44: #{tpu_custom_call.1} parent=1 // pred_region
      %312 = dma.done [#allocation3], 16
    $region45: #{tpu_custom_call.1} parent=1 // pred_fallthru
      _
    %313 = vsyncpa [#allocation3], 1
    %314 = vsyncpa [#allocation4], 1
    %315 = vsyncpa [#allocation6], 1

</llo_original>
